<compile_context>
chip_gen: v6e
topology: v6e:2x2x1
jax: 0.10.0
libtpu: 0.0.40
codegen_flags: <defaults>
</compile_context>

<pallas_src>
import jax
import jax.numpy as jnp
from jax.experimental import pallas as pl
from jax.experimental.pallas import tpu as pltpu


def _grads_calc_kernel(pos_t_ref, w1_ref, w1t_ref, b1t_ref, w2t_ref,
                       epart_ref, grad_t_ref):
    """One atom tile: forward energy partial + analytic dE/dpos (atoms on lanes)."""
    pos_t = pos_t_ref[...]        # (3, TN)   atoms on the lane axis
    w1 = w1_ref[...]              # (3, H)
    w1t = w1t_ref[...]            # (H, 3)    pre-transposed in the wrapper
    b1t = b1t_ref[...]            # (H, 1)
    w2t = w2t_ref[...]            # (H, 1)

    # ---- model forward:  h^T = tanh(W1^T @ pos^T + b1^T)  -> (H, TN)
    h = jnp.tanh(jnp.dot(w1t, pos_t, preferred_element_type=jnp.float32) + b1t)

    # ---- partial energy for this tile, written as a lane-dense slab.
    #      (wrapper reads element [0, 0] of each tile and sums across tiles)
    e_tile = jnp.sum(h * w2t)
    epart_ref[...] = jnp.full(epart_ref.shape, e_tile, dtype=jnp.float32)

    # ---- torch.autograd.grad equivalent (analytic):
    #      dE/dpos^T = W1 @ ((1 - h^2) * w2^T)  -> (3, TN), lane-dense store
    g_h = (1.0 - h * h) * w2t
    grad_t_ref[...] = jnp.dot(w1, g_h, preferred_element_type=jnp.float32)


def grads_calc(data, w1, b1, w2, *, tile_n=1024,
               key_of="energy", key_wrt=("pos",), key_out=("grad_pos",)):
    """Pallas implementation of GradsCalc.forward for the synthetic model.

    `data` is a dict (AtomGraphData analogue). Returns data updated with the
    model output (key_of) and the gradients (key_out), matching the PyTorch
    module's semantics of storing grads into the data dict.
    """
    # TODO(synk): generic GradsCalc supports multiple wrt tensors; only the
    # single-position-tensor case of the synthetic model is implemented here.
    pos = data[key_wrt[0]]                     # (N, 3)
    n, d = pos.shape
    h_dim = w1.shape[1]
    assert d == w1.shape[0]

    tile_n = min(tile_n, n)
    assert n % tile_n == 0, "N must be divisible by tile_n (pad atoms in caller)"
    assert tile_n % 128 == 0 or tile_n == n, "tile_n should be lane-aligned"
    num_tiles = n // tile_n

    # Wrapper-side layout plumbing: atoms on the lane (last) axis, weights
    # pre-transposed so the kernel never needs an XLU transpose per step.
    pos_t = pos.T                              # (3, N)
    w1t = w1.T                                 # (H, 3)
    b1t = b1.reshape(1, h_dim).T               # (H, 1)
    w2t = w2.reshape(1, h_dim).T               # (H, 1)

    e_part, grad_t = pl.pallas_call(
        _grads_calc_kernel,
        out_shape=(
            jax.ShapeDtypeStruct((num_tiles, 8, 128), jnp.float32),  # partials
            jax.ShapeDtypeStruct((d, n), jnp.float32),               # grad^T
        ),
        grid_spec=pltpu.PrefetchScalarGridSpec(
            num_scalar_prefetch=0,
            grid=(num_tiles,),
            in_specs=[
                pl.BlockSpec((d, tile_n), lambda i: (0, i)),      # pos^T tile
                pl.BlockSpec((d, h_dim), lambda i: (0, 0)),       # W1   (resident)
                pl.BlockSpec((h_dim, d), lambda i: (0, 0)),       # W1^T (resident)
                pl.BlockSpec((h_dim, 1), lambda i: (0, 0)),       # b1^T (resident)
                pl.BlockSpec((h_dim, 1), lambda i: (0, 0)),       # w2^T (resident)
            ],
            out_specs=(
                pl.BlockSpec((1, 8, 128), lambda i: (i, 0, 0)),   # per-tile energy
                pl.BlockSpec((d, tile_n), lambda i: (0, i)),      # grad^T tile
            ),
        ),
        compiler_params=pltpu.CompilerParams(
            # No cross-iteration state -> tiles shard across TensorCores (v7x).
            dimension_semantics=("parallel",),
        ),
    )(pos_t, w1, w1t, b1t, w2t)

    out = dict(data)
    out[key_of] = jnp.sum(e_part[:, 0, 0])     # tiny XLA reduction over tiles
    out[key_out[0]] = grad_t.T                 # back to (N, 3)
    return out


def _reference_energy(pos, w1, b1, w2):
    h = jnp.tanh(pos @ w1 + b1)
    return jnp.sum(h * w2)


if __name__ == "__main__":
    key = jax.random.PRNGKey(0)
    k_pos, k_w1, k_b1, k_w2 = jax.random.split(key, 4)

    N, D, H = 512, 3, 32   # atoms, xyz, hidden
    pos = jax.random.normal(k_pos, (N, D), dtype=jnp.float32)
    w1 = jax.random.normal(k_w1, (D, H), dtype=jnp.float32) * 0.3
    b1 = jax.random.normal(k_b1, (1, H), dtype=jnp.float32) * 0.1
    w2 = jax.random.normal(k_w2, (1, H), dtype=jnp.float32) * 0.3

    data = {"pos": pos}
    # tile_n=128 here so the demo exercises a multi-tile grid (4 steps);
    # production default is 1024+ atoms per tile.
    out = grads_calc(data, w1, b1, w2, tile_n=128)
    jax.block_until_ready(out["grad_pos"])
    jax.block_until_ready(out["energy"])

    # Check against pure-JAX autograd reference (what torch.autograd.grad does).
    ref_e = _reference_energy(pos, w1, b1, w2)
    ref_g = jax.grad(_reference_energy)(pos, w1, b1, w2)
    assert jnp.allclose(out["energy"], ref_e, atol=1e-3, rtol=1e-4)
    assert jnp.allclose(out["grad_pos"], ref_g, atol=1e-4, rtol=1e-4)

    print("KERNEL_OK")
</pallas_src>

<mosaic_0001>
module attributes {stable_mosaic.version = 11 : i64} {
  func.func @_grads_calc_kernel(%arg0: i32, %arg1: memref<3x128xf32, #tpu.memory_space<vmem>>, %arg2: memref<3x32xf32, #tpu.memory_space<vmem>>, %arg3: memref<32x3xf32, #tpu.memory_space<vmem>>, %arg4: memref<32x1xf32, #tpu.memory_space<vmem>>, %arg5: memref<32x1xf32, #tpu.memory_space<vmem>>, %arg6: memref<1x8x128xf32, #tpu.memory_space<vmem>>, %arg7: memref<3x128xf32, #tpu.memory_space<vmem>>) attributes {dimension_semantics = [#tpu.dimension_semantics<parallel>], iteration_bounds = array<i64: 4>, scalar_prefetch = 0 : i64, scratch_operands = 0 : i64, tpu.core_type = #tpu.core_type<tc>, window_params = [{transform_indices = @transform_0, window_bounds = array<i64: 3, 128>}, {pipeline_mode = #tpu.pipeline_mode<synchronous>, transform_indices = @transform_1, window_bounds = array<i64: 3, 32>}, {pipeline_mode = #tpu.pipeline_mode<synchronous>, transform_indices = @transform_2, window_bounds = array<i64: 32, 3>}, {pipeline_mode = #tpu.pipeline_mode<synchronous>, transform_indices = @transform_3, window_bounds = array<i64: 32, 1>}, {pipeline_mode = #tpu.pipeline_mode<synchronous>, transform_indices = @transform_4, window_bounds = array<i64: 32, 1>}, {transform_indices = @transform_5, window_bounds = array<i64: 1, 8, 128>}, {transform_indices = @transform_6, window_bounds = array<i64: 3, 128>}]} {
    %c0 = arith.constant 0 : index
    %c0_0 = arith.constant 0 : index
    %0 = vector.load %arg1[%c0, %c0_0] : memref<3x128xf32, #tpu.memory_space<vmem>>, vector<3x128xf32>
    %c0_1 = arith.constant 0 : index
    %c0_2 = arith.constant 0 : index
    %1 = vector.load %arg2[%c0_1, %c0_2] : memref<3x32xf32, #tpu.memory_space<vmem>>, vector<3x32xf32>
    %c0_3 = arith.constant 0 : index
    %c0_4 = arith.constant 0 : index
    %2 = vector.load %arg3[%c0_3, %c0_4] : memref<32x3xf32, #tpu.memory_space<vmem>>, vector<32x3xf32>
    %c0_5 = arith.constant 0 : index
    %c0_6 = arith.constant 0 : index
    %3 = vector.load %arg4[%c0_5, %c0_6] : memref<32x1xf32, #tpu.memory_space<vmem>>, vector<32x1xf32>
    %c0_7 = arith.constant 0 : index
    %c0_8 = arith.constant 0 : index
    %4 = vector.load %arg5[%c0_7, %c0_8] : memref<32x1xf32, #tpu.memory_space<vmem>>, vector<32x1xf32>
    %cst = arith.constant dense<0.000000e+00> : vector<32x128xf32>
    %5 = tpu.matmul %2, %0, %cst {dimension_numbers = #tpu.dot_dimension_numbers<[1], [0], [0], [1], [0, 0, 1, 1], [], []>} : vector<32x3xf32>, vector<3x128xf32>, vector<32x128xf32> -> vector<32x128xf32>
    %6 = vector.broadcast %3 : vector<32x1xf32> to vector<32x128xf32>
    %7 = arith.addf %5, %6 : vector<32x128xf32>
    %8 = math.tanh %7 : vector<32x128xf32>
    %9 = vector.broadcast %4 : vector<32x1xf32> to vector<32x128xf32>
    %10 = arith.mulf %8, %9 : vector<32x128xf32>
    %11 = vector.shape_cast %10 : vector<32x128xf32> to vector<1x32x128xf32>
    %cst_9 = arith.constant dense<0.000000e+00> : vector<1xf32>
    %12 = vector.multi_reduction <add>, %11, %cst_9 [1, 2] : vector<1x32x128xf32> to vector<1xf32>
    %13 = vector.shape_cast %12 : vector<1xf32> to vector<1x1x1xf32>
    %14 = vector.extract %13[0, 0, 0] : f32 from vector<1x1x1xf32>
    %15 = vector.broadcast %14 : f32 to vector<1x8x128xf32>
    %c0_10 = arith.constant 0 : index
    %c0_11 = arith.constant 0 : index
    %c0_12 = arith.constant 0 : index
    %16 = vector.load %arg6[%c0_10, %c0_11, %c0_12] : memref<1x8x128xf32, #tpu.memory_space<vmem>>, vector<1x8x128xf32>
    tpu.vector_store %arg6[%c0_10, %c0_11, %c0_12], %15 {strides = array<i32>} : memref<1x8x128xf32, #tpu.memory_space<vmem>>, vector<1x8x128xf32>,
    %17 = arith.mulf %8, %8 : vector<32x128xf32>
    %cst_13 = arith.constant 1.000000e+00 : f32
    %18 = vector.broadcast %cst_13 : f32 to vector<32x128xf32>
    %19 = arith.subf %18, %17 : vector<32x128xf32>
    %20 = vector.broadcast %4 : vector<32x1xf32> to vector<32x128xf32>
    %21 = arith.mulf %19, %20 : vector<32x128xf32>
    %cst_14 = arith.constant dense<0.000000e+00> : vector<3x128xf32>
    %22 = tpu.matmul %1, %21, %cst_14 {dimension_numbers = #tpu.dot_dimension_numbers<[1], [0], [0], [1], [0, 0, 1, 1], [], []>} : vector<3x32xf32>, vector<32x128xf32>, vector<3x128xf32> -> vector<3x128xf32>
    %c0_15 = arith.constant 0 : index
    %c0_16 = arith.constant 0 : index
    %23 = vector.load %arg7[%c0_15, %c0_16] : memref<3x128xf32, #tpu.memory_space<vmem>>, vector<3x128xf32>
    tpu.vector_store %arg7[%c0_15, %c0_16], %22 {strides = array<i32>} : memref<3x128xf32, #tpu.memory_space<vmem>>, vector<3x128xf32>,
    return
  }
  func.func @transform_0(%arg0: i32) -> (i32, i32) {
    %c0_i32 = arith.constant 0 : i32
    %c0_i32_0 = arith.constant 0 : i32
    return %c0_i32, %arg0 : i32, i32
  }
  func.func @transform_1(%arg0: i32) -> (i32, i32) {
    %c0_i32 = arith.constant 0 : i32
    %c0_i32_0 = arith.constant 0 : i32
    %c0_i32_1 = arith.constant 0 : i32
    return %c0_i32, %c0_i32_0 : i32, i32
  }
  func.func @transform_2(%arg0: i32) -> (i32, i32) {
    %c0_i32 = arith.constant 0 : i32
    %c0_i32_0 = arith.constant 0 : i32
    %c0_i32_1 = arith.constant 0 : i32
    return %c0_i32, %c0_i32_0 : i32, i32
  }
  func.func @transform_3(%arg0: i32) -> (i32, i32) {
    %c0_i32 = arith.constant 0 : i32
    %c0_i32_0 = arith.constant 0 : i32
    %c0_i32_1 = arith.constant 0 : i32
    return %c0_i32, %c0_i32_0 : i32, i32
  }
  func.func @transform_4(%arg0: i32) -> (i32, i32) {
    %c0_i32 = arith.constant 0 : i32
    %c0_i32_0 = arith.constant 0 : i32
    %c0_i32_1 = arith.constant 0 : i32
    return %c0_i32, %c0_i32_0 : i32, i32
  }
  func.func @transform_5(%arg0: i32) -> (i32, i32, i32) {
    %c0_i32 = arith.constant 0 : i32
    %c0_i32_0 = arith.constant 0 : i32
    %c0_i32_1 = arith.constant 0 : i32
    return %arg0, %c0_i32, %c0_i32_0 : i32, i32, i32
  }
  func.func @transform_6(%arg0: i32) -> (i32, i32) {
    %c0_i32 = arith.constant 0 : i32
    %c0_i32_0 = arith.constant 0 : i32
    return %c0_i32, %arg0 : i32, i32
  }
}

</mosaic_0001>

<llo_original>
// kernel: tpu_custom_call.1
$region0: #{tpu_custom_call.1}
  #allocation0 [shape = 'u32[]', space=smem, size = 0x4, offset = 0x4, fixed_abs, tag = 'smem constant byte address 0x4 - core index']
  #allocation1 [shape = 'u32[144,128]{1,0:T(1,128)}', space=vmem, size = 0x12000, scoped, tag = 'internal scratch']
  %s0 = inlined_call_operand.vmem [shape: f32[3,512], index: 0, kind: input, shape index: {}]
  %s1 = inlined_call_operand.vmem [shape: f32[3,32], index: 1, kind: input, shape index: {}]
  %s2 = inlined_call_operand.vmem [shape: f32[32,3], index: 2, kind: input, shape index: {}]
  %s3 = inlined_call_operand.vmem [shape: f32[32,1], index: 3, kind: input, shape index: {}]
  %s4 = inlined_call_operand.vmem [shape: f32[32,1], index: 4, kind: input, shape index: {}]
  %s5 = inlined_call_operand.hbm [shape: f32[4,8,128], index: 5, kind: output, shape index: {0}]
  %s6 = inlined_call_operand.hbm [shape: f32[3,512], index: 6, kind: output, shape index: {1}]
  %7 = xla_tuple %s5, %s6
  %s8 = sld [smem:[#allocation0]]
  $region61: #{tpu_custom_call.1} parent=0
    _
  %s10 = ssub.s32 1, %s8
  %s11 = scalar_select 0, %s10, %s8
  $region1: #{tpu_custom_call.1} parent=0
    #allocation2 [shape = 'u8[8192]{0}', space=vmem, size = 0x2000, scoped, tag = 'output window, operand 0']
    #allocation3 [shape = 's32[2]{0}', space=sflag, size = 0x8, scoped, tag = 'scoped memory for tpu_custom_call.1']
    #allocation4 [shape = 'u8[4096]{0}', space=vmem, size = 0x1000, scoped, tag = 'output window, operand 1']
    #allocation5 [shape = 's32[2]{0}', space=sflag, size = 0x8, scoped, tag = 'scoped memory for tpu_custom_call.1']
    %12 = vsyncpa [#allocation3], 0
    %s13 = scalar_lea.sflag [#allocation3], 1
    %14 = vsyncpa %s13, 0
    %15 = vsyncpa [#allocation5], 0
    %s16 = scalar_lea.sflag [#allocation5], 1
    %17 = vsyncpa %s16, 0
    loop: start=0, step=1, limit=6
    $region2: #{tpu_custom_call.1} parent=1 // loop_pre_header
      _
    $region3: #{tpu_custom_call.1} parent=1 // loop_header
      %s19 = sphi 0, %s23
      %p20 = scmp.ge.s32.totalorder %s19, 6
      %s29 = sphi 0, %s31
      %s32 = sphi 0, %s29
      %s33 = sphi 0, %s32
      %s49 = sphi 0, %s33
      %s53 = sphi 0, %s53
      %s55 = sphi 0, %s53
      %s56 = sphi 0, %s55
      %s70 = sphi 0, %s56
      %s74 = sphi 0, %s74
      %s76 = sphi 0, %s74
      %s77 = sphi 0, %s76
      %s91 = sphi 0, %s77
      %s95 = sphi 0, %s95
      %s97 = sphi 0, %s95
      %s98 = sphi 0, %s97
      %s112 = sphi 0, %s98
      %s116 = sphi 0, %s116
      %s118 = sphi 0, %s116
      %s119 = sphi 0, %s118
      %s133 = sphi 0, %s119
      %s139 = sphi 0, %s141
      %s142 = sphi 0, %s139
      %s143 = sphi 0, %s142
      %s159 = sphi 0, %s143
      %s165 = sphi 0, %s167
      %s168 = sphi 0, %s165
      %s169 = sphi 0, %s168
      %s185 = sphi 0, %s169
    $region4: #{tpu_custom_call.1} parent=1 // loop_header_branch
      %22 = sbr.rel (%p20) target = $region8
    $region5: #{tpu_custom_call.1} parent=1 // loop_body
      %s24 = ssub.s32 %s19, 1
      %s25 = ssub.s32 %s19, 2
      %s26 = sadd.s32 %s19, 1
      %s27 = ssub.s32 %s19, %s26
      %p28 = scmp.eq.s32.totalorder %s27, 0
      %s30 = sadd.s32 %s29, 1
      %s31 = scalar_select %p28, %s29, %s30
      %p34 = pneg %p28
      %p35 = scmp.eq.s32.totalorder %s19, 3
      %p36 = por %p34, %p35
      %p37 = scmp.ne.s32.totalorder %s29, %s32
      %p38 = scmp.eq.s32.totalorder %s19, 0
      %p39 = por %p37, %p38
      %p40 = scmp.ne.s32.totalorder %s29, %s32
      %p41 = scmp.eq.s32.totalorder %s24, 3
      %p42 = por %p40, %p41
      %p43 = scmp.ne.s32.totalorder %s32, %s33
      %p44 = scmp.eq.s32.totalorder %s24, 0
      %p45 = por %p43, %p44
      %p46 = scmp.ne.s32.totalorder %s32, %s33
      %p47 = scmp.eq.s32.totalorder %s25, 3
      %p48 = por %p46, %p47
      %p50 = scmp.ne.s32.totalorder %s33, %s49
      %p51 = scmp.eq.s32.totalorder %s25, 0
      %p52 = por %p50, %p51
      %s54 = sadd.s32 %s53, 1
      %p57 = scmp.eq.s32.totalorder %s19, 3
      %p58 = scmp.ne.s32.totalorder %s53, %s55
      %p59 = scmp.eq.s32.totalorder %s19, 0
      %p60 = por %p58, %p59
      %p61 = scmp.ne.s32.totalorder %s53, %s55
      %p62 = scmp.eq.s32.totalorder %s24, 3
      %p63 = por %p61, %p62
      %p64 = scmp.ne.s32.totalorder %s55, %s56
      %p65 = scmp.eq.s32.totalorder %s24, 0
      %p66 = por %p64, %p65
      %p67 = scmp.ne.s32.totalorder %s55, %s56
      %p68 = scmp.eq.s32.totalorder %s25, 3
      %p69 = por %p67, %p68
      %p71 = scmp.ne.s32.totalorder %s56, %s70
      %p72 = scmp.eq.s32.totalorder %s25, 0
      %p73 = por %p71, %p72
      %s75 = sadd.s32 %s74, 1
      %p78 = scmp.eq.s32.totalorder %s19, 3
      %p79 = scmp.ne.s32.totalorder %s74, %s76
      %p80 = scmp.eq.s32.totalorder %s19, 0
      %p81 = por %p79, %p80
      %p82 = scmp.ne.s32.totalorder %s74, %s76
      %p83 = scmp.eq.s32.totalorder %s24, 3
      %p84 = por %p82, %p83
      %p85 = scmp.ne.s32.totalorder %s76, %s77
      %p86 = scmp.eq.s32.totalorder %s24, 0
      %p87 = por %p85, %p86
      %p88 = scmp.ne.s32.totalorder %s76, %s77
      %p89 = scmp.eq.s32.totalorder %s25, 3
      %p90 = por %p88, %p89
      %p92 = scmp.ne.s32.totalorder %s77, %s91
      %p93 = scmp.eq.s32.totalorder %s25, 0
      %p94 = por %p92, %p93
      %s96 = sadd.s32 %s95, 1
      %p99 = scmp.eq.s32.totalorder %s19, 3
      %p100 = scmp.ne.s32.totalorder %s95, %s97
      %p101 = scmp.eq.s32.totalorder %s19, 0
      %p102 = por %p100, %p101
      %p103 = scmp.ne.s32.totalorder %s95, %s97
      %p104 = scmp.eq.s32.totalorder %s24, 3
      %p105 = por %p103, %p104
      %p106 = scmp.ne.s32.totalorder %s97, %s98
      %p107 = scmp.eq.s32.totalorder %s24, 0
      %p108 = por %p106, %p107
      %p109 = scmp.ne.s32.totalorder %s97, %s98
      %p110 = scmp.eq.s32.totalorder %s25, 3
      %p111 = por %p109, %p110
      %p113 = scmp.ne.s32.totalorder %s98, %s112
      %p114 = scmp.eq.s32.totalorder %s25, 0
      %p115 = por %p113, %p114
      %s117 = sadd.s32 %s116, 1
      %p120 = scmp.eq.s32.totalorder %s19, 3
      %p121 = scmp.ne.s32.totalorder %s116, %s118
      %p122 = scmp.eq.s32.totalorder %s19, 0
      %p123 = por %p121, %p122
      %p124 = scmp.ne.s32.totalorder %s116, %s118
      %p125 = scmp.eq.s32.totalorder %s24, 3
      %p126 = por %p124, %p125
      %p127 = scmp.ne.s32.totalorder %s118, %s119
      %p128 = scmp.eq.s32.totalorder %s24, 0
      %p129 = por %p127, %p128
      %p130 = scmp.ne.s32.totalorder %s118, %s119
      %p131 = scmp.eq.s32.totalorder %s25, 3
      %p132 = por %p130, %p131
      %p134 = scmp.ne.s32.totalorder %s119, %s133
      %p135 = scmp.eq.s32.totalorder %s25, 0
      %p136 = por %p134, %p135
      %s137 = ssub.s32 %s19, %s26
      %p138 = scmp.eq.s32.totalorder %s137, 0
      %s140 = sadd.s32 %s139, 1
      %s141 = scalar_select %p138, %s139, %s140
      %p144 = pneg %p138
      %p145 = scmp.eq.s32.totalorder %s19, 3
      %p146 = por %p144, %p145
      %p147 = scmp.ne.s32.totalorder %s139, %s142
      %p148 = scmp.eq.s32.totalorder %s19, 0
      %p149 = por %p147, %p148
      %p150 = scmp.ne.s32.totalorder %s139, %s142
      %p151 = scmp.eq.s32.totalorder %s24, 3
      %p152 = por %p150, %p151
      %p153 = scmp.ne.s32.totalorder %s142, %s143
      %p154 = scmp.eq.s32.totalorder %s24, 0
      %p155 = por %p153, %p154
      %p156 = scmp.ne.s32.totalorder %s142, %s143
      %p157 = scmp.eq.s32.totalorder %s25, 3
      %p158 = por %p156, %p157
      %p160 = scmp.ne.s32.totalorder %s143, %s159
      %p161 = scmp.eq.s32.totalorder %s25, 0
      %p162 = por %p160, %p161
      %s163 = ssub.s32 %s19, %s26
      %p164 = scmp.eq.s32.totalorder %s163, 0
      %s166 = sadd.s32 %s165, 1
      %s167 = scalar_select %p164, %s165, %s166
      %p170 = pneg %p164
      %p171 = scmp.eq.s32.totalorder %s19, 3
      %p172 = por %p170, %p171
      %p173 = scmp.ne.s32.totalorder %s165, %s168
      %p174 = scmp.eq.s32.totalorder %s19, 0
      %p175 = por %p173, %p174
      %p176 = scmp.ne.s32.totalorder %s165, %s168
      %p177 = scmp.eq.s32.totalorder %s24, 3
      %p178 = por %p176, %p177
      %p179 = scmp.ne.s32.totalorder %s168, %s169
      %p180 = scmp.eq.s32.totalorder %s24, 0
      %p181 = por %p179, %p180
      %p182 = scmp.ne.s32.totalorder %s168, %s169
      %p183 = scmp.eq.s32.totalorder %s25, 3
      %p184 = por %p182, %p183
      %p186 = scmp.ne.s32.totalorder %s169, %s185
      %p187 = scmp.eq.s32.totalorder %s25, 0
      %p188 = por %p186, %p187
      %p189 = scmp.le.s32.totalorder 1, %s19
      %p190 = scmp.lt.s32.totalorder %s19, 5
      %p191 = pnand %p189, %p190
      %p192 = pneg %p191
      // Predicated region
      $region9: #{tpu_custom_call.1} parent=5 // pred_check
        _
      $region10: #{tpu_custom_call.1} parent=5 // pred_check_branch
        %194 = sbr.rel (%p191) target = $region12
      $region11: #{tpu_custom_call.1} parent=5 // pred_region
        %s195 = ssub.s32 %s19, 1
        // Predicated region
        $region13: #{tpu_custom_call.1} parent=11 // pred_check
          %p196 = pneg %p66
        $region14: #{tpu_custom_call.1} parent=11 // pred_check_branch
          %198 = sbr.rel (%p196) target = $region16
        $region15: #{tpu_custom_call.1} parent=11 // pred_region
          _
        $region16: #{tpu_custom_call.1} parent=11 // pred_fallthru
          _
        // Predicated region
        $region17: #{tpu_custom_call.1} parent=11 // pred_check
          %p199 = pneg %p87
        $region18: #{tpu_custom_call.1} parent=11 // pred_check_branch
          %201 = sbr.rel (%p199) target = $region20
        $region19: #{tpu_custom_call.1} parent=11 // pred_region
          _
        $region20: #{tpu_custom_call.1} parent=11 // pred_fallthru
          _
        // Predicated region
        $region21: #{tpu_custom_call.1} parent=11 // pred_check
          %p202 = pneg %p108
        $region22: #{tpu_custom_call.1} parent=11 // pred_check_branch
          %204 = sbr.rel (%p202) target = $region24
        $region23: #{tpu_custom_call.1} parent=11 // pred_region
          _
        $region24: #{tpu_custom_call.1} parent=11 // pred_fallthru
          _
        // Predicated region
        $region25: #{tpu_custom_call.1} parent=11 // pred_check
          %p205 = pneg %p129
        $region26: #{tpu_custom_call.1} parent=11 // pred_check_branch
          %207 = sbr.rel (%p205) target = $region28
        $region27: #{tpu_custom_call.1} parent=11 // pred_region
          _
        $region28: #{tpu_custom_call.1} parent=11 // pred_fallthru
          _
      $region12: #{tpu_custom_call.1} parent=5 // pred_fallthru
        _
      %p208 = scmp.lt.s32.totalorder %s19, 4
      // Predicated region
      $region29: #{tpu_custom_call.1} parent=5 // pred_check
        %p209 = pneg %p208
      $region30: #{tpu_custom_call.1} parent=5 // pred_check_branch
        %211 = sbr.rel (%p209) target = $region32
      $region31: #{tpu_custom_call.1} parent=5 // pred_region
        // Predicated region
        $region33: #{tpu_custom_call.1} parent=31 // pred_check
          %p212 = pneg %p39
        $region34: #{tpu_custom_call.1} parent=31 // pred_check_branch
          %214 = sbr.rel (%p212) target = $region36
        $region35: #{tpu_custom_call.1} parent=31 // pred_region
          %p215 = scmp.lt.s32.totalorder %s19, 3
          %s216 = scalar_select %p215, %s19, 3
          %s217 = smul.addr %s216, 4
          %s218 = scalar_lea.vmem %s0, %s217
        $region36: #{tpu_custom_call.1} parent=31 // pred_fallthru
          _
      $region32: #{tpu_custom_call.1} parent=5 // pred_fallthru
        _
      %p219 = scmp.le.s32.totalorder 1, %s19
      %p220 = scmp.lt.s32.totalorder %s19, 5
      %p221 = pnand %p219, %p220
      %p222 = pneg %p221
      // Predicated region
      $region37: #{tpu_custom_call.1} parent=5 // pred_check
        _
      $region38: #{tpu_custom_call.1} parent=5 // pred_check_branch
        %224 = sbr.rel (%p221) target = $region40
      $region39: #{tpu_custom_call.1} parent=5 // pred_region
        %s225 = ssub.s32 %s19, 1
        %p226 = scmp.lt.s32.totalorder %s24, 3
        %s227 = scalar_select %p226, %s24, 3
        %s228 = smul.addr %s227, 4
        %s229 = scalar_lea.vmem %s0, %s228
        %p230 = pneg %p45
        %p231 = pneg %p42
        %p232 = pneg %p66
        %p233 = pneg %p63
        %p234 = pneg %p87
        %p235 = pneg %p84
        %p236 = pneg %p108
        %p237 = pneg %p105
        %p238 = pneg %p129
        %p239 = pneg %p126
        %p240 = pneg %p155
        %p241 = pneg %p152
        %s242 = sand.u32 %s142, 1
        %s243 = scalar_lea.sflag [#allocation3], %s242
        %s244 = sand.u32 %s142, 1
        %s245 = smul.addr %s244, 8
        %s246 = scalar_lea.vmem [#allocation2], %s245
        %p247 = pneg %p181
        %p248 = pneg %p178
        %s249 = sand.u32 %s168, 1
        %s250 = scalar_lea.sflag [#allocation5], %s249
        %s251 = sand.u32 %s168, 1
        %s252 = smul.addr %s251, 4
        %s253 = scalar_lea.vmem [#allocation4], %s252
        %p254 = scmp.lt.s32.totalorder %s24, 3
        %s255 = scalar_select %p254, %s24, 3
        %s256 = smul.addr %s255, 4
        %s257 = scalar_lea.vmem %s0, %s256
        %v258 = vld [vmem:[%s257] sm:$0x7]
        %v259 = vld [vmem:[%s1] sm:$0x7]
        %v260 = vld [vmem:[%s2] sm:$0xff]
        %v261 = vld [vmem:[%s2 + $0x8] sm:$0xff]
        %v262 = vld [vmem:[%s2 + $0x10] sm:$0xff]
        %v263 = vld [vmem:[%s2 + $0x18] sm:$0xff]
        %v264 = vld [vmem:[%s3] sm:$0xff]
        %v265 = vld [vmem:[%s3 + $0x8] sm:$0xff]
        %v266 = vld [vmem:[%s3 + $0x10] sm:$0xff]
        %v267 = vld [vmem:[%s3 + $0x18] sm:$0xff]
        %v268 = vld [vmem:[%s4] sm:$0xff]
        %v269 = vld [vmem:[%s4 + $0x8] sm:$0xff]
        %v270 = vld [vmem:[%s4 + $0x10] sm:$0xff]
        %v271 = vld [vmem:[%s4 + $0x18] sm:$0xff]
        %273 = vset.pattern.permute.xlu0 0
        %274 = vperm.xlu0 %273, %v264
        %v275 = vpop.permute.xlu0 %274
        %278 = vset.pattern.permute.xlu0 0
        %279 = vperm.xlu0 %278, %v265
        %v280 = vpop.permute.xlu0 %279
        %283 = vset.pattern.permute.xlu0 0
        %284 = vperm.xlu0 %283, %v266
        %v285 = vpop.permute.xlu0 %284
        %288 = vset.pattern.permute.xlu0 0
        %289 = vperm.xlu0 %288, %v267
        %v290 = vpop.permute.xlu0 %289
        %vm292 = vcmask 23552
        %v294 = vsel %vm292, %v260, 0
        %v297 = vsel %vm292, %v261, 0
        %v300 = vsel %vm292, %v262, 0
        %v303 = vsel %vm292, %v263, 0
        %vm305 = vcmask 1042432
        %v307 = vsel %vm305, %v258, 0
        %309 = vmatprep.subr.mxu0 0.0
        %310 = vmatpush1.msra.mxu0 0.0
        %311 = vmatprep.subr.mxu0 0.0
        %312 = vmatpush1.msra.mxu0 0.0
        %313 = vmatprep.subr.mxu0 0.0
        %314 = vmatpush1.msra.mxu0 0.0
        %315 = vmatprep.subr.mxu0 0.0
        %316 = vmatpush1.msra.mxu0 0.0
        %317 = vmatprep.subr.mxu0 0.0
        %318 = vmatpush1.msra.mxu0 0.0
        %319 = vmatprep.subr.mxu0 0.0
        %320 = vmatpush1.msra.mxu0 0.0
        %321 = vmatprep.subr.mxu0 0.0
        %322 = vmatpush1.msra.mxu0 0.0
        %323 = vmatprep.subr.mxu0 0.0
        %324 = vmatpush1.msra.mxu0 0.0
        %325 = vmatprep.subr.mxu0 0.0
        %326 = vmatpush1.msra.mxu0 0.0
        %327 = vmatprep.subr.mxu0 0.0
        %328 = vmatpush1.msra.mxu0 0.0
        %329 = vmatprep.subr.mxu0 0.0
        %330 = vmatpush1.msra.mxu0 0.0
        %331 = vmatprep.subr.mxu0 0.0
        %332 = vmatpush1.msra.mxu0 0.0
        %333 = vmatprep.subr.mxu0 0.0
        %334 = vmatpush1.msra.mxu0 0.0
        %335 = vmatprep.subr.mxu0 0.0
        %336 = vmatpush1.msra.mxu0 0.0
        %337 = vmatprep.subr.mxu0 0.0
        %338 = vmatpush1.msra.mxu0 0.0
        %339 = vmatprep.subr.mxu0 0.0
        %340 = vmatpush1.msra.mxu0 %v307
        %341 = vmatprep.subr.mxu0 0.0
        %342 = vmatpush2.msra.mxu0 0.0
        %343 = vmatprep.subr.mxu0 0.0
        %344 = vmatpush2.msra.mxu0 0.0
        %345 = vmatprep.subr.mxu0 0.0
        %346 = vmatpush2.msra.mxu0 0.0
        %347 = vmatprep.subr.mxu0 0.0
        %348 = vmatpush2.msra.mxu0 0.0
        %349 = vmatprep.subr.mxu0 0.0
        %350 = vmatpush2.msra.mxu0 0.0
        %351 = vmatprep.subr.mxu0 0.0
        %352 = vmatpush2.msra.mxu0 0.0
        %353 = vmatprep.subr.mxu0 0.0
        %354 = vmatpush2.msra.mxu0 0.0
        %355 = vmatprep.subr.mxu0 0.0
        %356 = vmatpush2.msra.mxu0 0.0
        %357 = vmatprep.subr.mxu0 0.0
        %358 = vmatpush2.msra.mxu0 0.0
        %359 = vmatprep.subr.mxu0 0.0
        %360 = vmatpush2.msra.mxu0 0.0
        %361 = vmatprep.subr.mxu0 0.0
        %362 = vmatpush2.msra.mxu0 0.0
        %363 = vmatprep.subr.mxu0 0.0
        %364 = vmatpush2.msra.mxu0 0.0
        %365 = vmatprep.subr.mxu0 0.0
        %366 = vmatpush2.msra.mxu0 0.0
        %367 = vmatprep.subr.mxu0 0.0
        %368 = vmatpush2.msra.mxu0 0.0
        %369 = vmatprep.subr.mxu0 0.0
        %370 = vmatpush2.msra.mxu0 0.0
        %371 = vmatprep.subr.mxu0 0.0
        %372 = vmatpush2.msra.mxu0 0.0
        %373 = vmatprep.mubr.f32.mxu0 0.0
        %374 = vmatmul.mubr.f32.gmra.mxu0 %v294
        %v375 = vpop.f32.mrf.mxu0
        %v376 = vadd.f32 %v275, %v375
        %v377 = vpop.f32.mrf.mxu0
        %378 = vmatprep.mubr.f32.mxu0 0.0
        %379 = vmatmul.mubr.f32.gmra.mxu0 %v297
        %v380 = vpop.f32.mrf.mxu0
        %v381 = vadd.f32 %v280, %v380
        %v382 = vpop.f32.mrf.mxu0
        %383 = vmatprep.mubr.f32.mxu0 0.0
        %384 = vmatmul.mubr.f32.gmra.mxu0 %v300
        %v385 = vpop.f32.mrf.mxu0
        %v386 = vadd.f32 %v285, %v385
        %v387 = vpop.f32.mrf.mxu0
        %388 = vmatprep.mubr.f32.mxu0 0.0
        %389 = vmatmul.mubr.f32.gmra.mxu0 %v303
        %v390 = vpop.f32.mrf.mxu0
        %v391 = vadd.f32 %v290, %v390
        %v392 = vpop.f32.mrf.mxu0
        %393 = vdwg.mxu0
        %v394 = vtanh.pop %v376
        %v395 = vtanh.pop %v381
        %v396 = vtanh.pop %v386
        %v397 = vtanh.pop %v391
        %399 = vset.pattern.permute.xlu0 0
        %400 = vperm.xlu0 %399, %v268
        %v401 = vpop.permute.xlu0 %400
        %404 = vset.pattern.permute.xlu0 0
        %405 = vperm.xlu0 %404, %v269
        %v406 = vpop.permute.xlu0 %405
        %409 = vset.pattern.permute.xlu0 0
        %410 = vperm.xlu0 %409, %v270
        %v411 = vpop.permute.xlu0 %410
        %414 = vset.pattern.permute.xlu0 0
        %415 = vperm.xlu0 %414, %v271
        %v416 = vpop.permute.xlu0 %415
        %v418 = vmul.f32 %v394, %v401
        %v419 = vmul.f32 %v395, %v406
        %v420 = vmul.f32 %v396, %v411
        %v421 = vmul.f32 %v397, %v416
        %v422 = vadd.f32 %v418, %v419
        %v423 = vadd.f32 %v422, %v420
        %v424 = vadd.f32 %v423, %v421
        %425 = vadd.xlane.f32.xlu0 %v424
        %v426 = vpop.xlane.xlu0 %425
        %v427 = vrot.slane %v426, 4
        %v428 = vadd.f32 %v426, %v427
        %v429 = vrot.slane %v428, 2
        %v430 = vadd.f32 %v428, %v429
        %v431 = vrot.slane %v430, 1
        %v432 = vadd.f32 %v430, %v431
        %s433 = vtos %v432
        %v434 = vstv %s433
        %435 = vst [vmem:[%s246] sm:$0xff] %v434
        %v436 = vmul.f32 %v394, %v394
        %v437 = vmul.f32 %v395, %v395
        %v438 = vmul.f32 %v396, %v396
        %v439 = vmul.f32 %v397, %v397
        %v440 = vsub.f32 1.0, %v436
        %v441 = vsub.f32 1.0, %v437
        %v442 = vsub.f32 1.0, %v438
        %v443 = vsub.f32 1.0, %v439
        %v444 = vmul.f32 %v440, %v401
        %v445 = vmul.f32 %v441, %v406
        %v446 = vmul.f32 %v442, %v411
        %v447 = vmul.f32 %v443, %v416
        %vm448 = vcmask 261120
        %v450 = vsel %vm448, %v259, 0
        %452 = vmatprep.subr.mxu0 0.0
        %453 = vmatpush1.msra.mxu0 0.0
        %454 = vmatprep.subr.mxu0 0.0
        %455 = vmatpush1.msra.mxu0 0.0
        %456 = vmatprep.subr.mxu0 0.0
        %457 = vmatpush1.msra.mxu0 0.0
        %458 = vmatprep.subr.mxu0 0.0
        %459 = vmatpush1.msra.mxu0 0.0
        %460 = vmatprep.subr.mxu0 0.0
        %461 = vmatpush1.msra.mxu0 0.0
        %462 = vmatprep.subr.mxu0 0.0
        %463 = vmatpush1.msra.mxu0 0.0
        %464 = vmatprep.subr.mxu0 0.0
        %465 = vmatpush1.msra.mxu0 0.0
        %466 = vmatprep.subr.mxu0 0.0
        %467 = vmatpush1.msra.mxu0 0.0
        %468 = vmatprep.subr.mxu0 0.0
        %469 = vmatpush1.msra.mxu0 0.0
        %470 = vmatprep.subr.mxu0 0.0
        %471 = vmatpush1.msra.mxu0 0.0
        %472 = vmatprep.subr.mxu0 0.0
        %473 = vmatpush1.msra.mxu0 0.0
        %474 = vmatprep.subr.mxu0 0.0
        %475 = vmatpush1.msra.mxu0 0.0
        %476 = vmatprep.subr.mxu0 0.0
        %477 = vmatpush1.msra.mxu0 %v447
        %478 = vmatprep.subr.mxu0 0.0
        %479 = vmatpush1.msra.mxu0 %v446
        %480 = vmatprep.subr.mxu0 0.0
        %481 = vmatpush1.msra.mxu0 %v445
        %482 = vmatprep.subr.mxu0 0.0
        %483 = vmatpush1.msra.mxu0 %v444
        %484 = vmatprep.subr.mxu0 0.0
        %485 = vmatpush2.msra.mxu0 0.0
        %486 = vmatprep.subr.mxu0 0.0
        %487 = vmatpush2.msra.mxu0 0.0
        %488 = vmatprep.subr.mxu0 0.0
        %489 = vmatpush2.msra.mxu0 0.0
        %490 = vmatprep.subr.mxu0 0.0
        %491 = vmatpush2.msra.mxu0 0.0
        %492 = vmatprep.subr.mxu0 0.0
        %493 = vmatpush2.msra.mxu0 0.0
        %494 = vmatprep.subr.mxu0 0.0
        %495 = vmatpush2.msra.mxu0 0.0
        %496 = vmatprep.subr.mxu0 0.0
        %497 = vmatpush2.msra.mxu0 0.0
        %498 = vmatprep.subr.mxu0 0.0
        %499 = vmatpush2.msra.mxu0 0.0
        %500 = vmatprep.subr.mxu0 0.0
        %501 = vmatpush2.msra.mxu0 0.0
        %502 = vmatprep.subr.mxu0 0.0
        %503 = vmatpush2.msra.mxu0 0.0
        %504 = vmatprep.subr.mxu0 0.0
        %505 = vmatpush2.msra.mxu0 0.0
        %506 = vmatprep.subr.mxu0 0.0
        %507 = vmatpush2.msra.mxu0 0.0
        %508 = vmatprep.subr.mxu0 0.0
        %509 = vmatpush2.msra.mxu0 0.0
        %510 = vmatprep.subr.mxu0 0.0
        %511 = vmatpush2.msra.mxu0 0.0
        %512 = vmatprep.subr.mxu0 0.0
        %513 = vmatpush2.msra.mxu0 0.0
        %514 = vmatprep.subr.mxu0 0.0
        %515 = vmatpush2.msra.mxu0 0.0
        %516 = vmatprep.mubr.f32.mxu0 0.0
        %517 = vmatmul.mubr.f32.gmra.mxu0 %v450
        %v518 = vpop.f32.mrf.mxu0
        %v519 = vadd.f32 0.0, %v518
        %v520 = vpop.f32.mrf.mxu0
        %521 = vdwg.mxu0
        %522 = vst [vmem:[%s253] sm:$0x7] %v519
        %s523 = sand.u32 %s142, 1
        %s524 = scalar_lea.sflag [#allocation3], %s523
        %s525 = sand.u32 %s142, 1
        %s526 = smul.addr %s525, 8
        %s527 = scalar_lea.vmem [#allocation2], %s526
        %s528 = sand.u32 %s168, 1
        %s529 = scalar_lea.sflag [#allocation5], %s528
        %s530 = sand.u32 %s168, 1
        %s531 = smul.addr %s530, 4
        %s532 = scalar_lea.vmem [#allocation4], %s531
        // Predicated region
        $region41: #{tpu_custom_call.1} parent=39 // pred_check
          %p533 = pneg %p152
        $region42: #{tpu_custom_call.1} parent=39 // pred_check_branch
          %535 = sbr.rel (%p533) target = $region44
        $region43: #{tpu_custom_call.1} parent=39 // pred_region
          %s537 = ssub.s32 128, 128
          %538 = vsyncadd %s524, %s537
          %s539 = smul.addr %s24, 128
          %s540 = scalar_lea.hbm %s5, %s539
          %s542 = sshll.u32 %s527, 4
          %s543 = int_to_ptr.vmem [resolvable:$true] %s542
          %545 = dma.vmem_to_hbm [thread:$0]  %s543, 128, %s540, %s524
        $region44: #{tpu_custom_call.1} parent=39 // pred_fallthru
          _
        // Predicated region
        $region45: #{tpu_custom_call.1} parent=39 // pred_check
          %p546 = pneg %p178
        $region46: #{tpu_custom_call.1} parent=39 // pred_check_branch
          %548 = sbr.rel (%p546) target = $region48
        $region47: #{tpu_custom_call.1} parent=39 // pred_region
          %s550 = ssub.s32 64, 64
          %551 = vsyncadd %s529, %s550
          %s552 = smul.addr %s24, 64
          %s553 = scalar_lea.hbm %s6, %s552
          %s555 = sshll.u32 %s532, 4
          %s556 = int_to_ptr.vmem [resolvable:$true] %s555
          %558 = dma.vmem_to_hbm [thread:$0]  %s556, 64, %s553, %s529
        $region48: #{tpu_custom_call.1} parent=39 // pred_fallthru
          _
      $region40: #{tpu_custom_call.1} parent=5 // pred_fallthru
        _
      %p559 = scmp.le.s32.totalorder 2, %s19
      // Predicated region
      $region49: #{tpu_custom_call.1} parent=5 // pred_check
        %p560 = pneg %p559
      $region50: #{tpu_custom_call.1} parent=5 // pred_check_branch
        %562 = sbr.rel (%p560) target = $region52
      $region51: #{tpu_custom_call.1} parent=5 // pred_region
        %s563 = ssub.s32 %s19, 2
        // Predicated region
        $region53: #{tpu_custom_call.1} parent=51 // pred_check
          %p564 = pneg %p158
        $region54: #{tpu_custom_call.1} parent=51 // pred_check_branch
          %566 = sbr.rel (%p564) target = $region56
        $region55: #{tpu_custom_call.1} parent=51 // pred_region
          %s567 = sand.u32 %s143, 1
          %s568 = scalar_lea.sflag [#allocation3], %s567
          %s569 = sand.u32 %s143, 1
          %s570 = smul.addr %s569, 8
          %s571 = scalar_lea.vmem [#allocation2], %s570
          %572 = dma.done %s568, 128
        $region56: #{tpu_custom_call.1} parent=51 // pred_fallthru
          _
        // Predicated region
        $region57: #{tpu_custom_call.1} parent=51 // pred_check
          %p573 = pneg %p184
        $region58: #{tpu_custom_call.1} parent=51 // pred_check_branch
          %575 = sbr.rel (%p573) target = $region60
        $region59: #{tpu_custom_call.1} parent=51 // pred_region
          %s576 = sand.u32 %s169, 1
          %s577 = scalar_lea.sflag [#allocation5], %s576
          %s578 = sand.u32 %s169, 1
          %s579 = smul.addr %s578, 4
          %s580 = scalar_lea.vmem [#allocation4], %s579
          %581 = dma.done %s577, 64
        $region60: #{tpu_custom_call.1} parent=51 // pred_fallthru
          _
      $region52: #{tpu_custom_call.1} parent=5 // pred_fallthru
        _
    $region6: #{tpu_custom_call.1} parent=1 // loop_footer
      %s23 = sadd.s32 1, %s19
    $region7: #{tpu_custom_call.1} parent=1 // loop_footer_branch
      %18 = sbr.rel target = $region3
    $region8: #{tpu_custom_call.1} parent=1 // loop_exit
      _
    %582 = vsyncpa [#allocation3], 1
    %s583 = scalar_lea.sflag [#allocation3], 1
    %584 = vsyncpa %s583, 1
    %585 = vsyncpa [#allocation5], 1
    %s586 = scalar_lea.sflag [#allocation5], 1
    %587 = vsyncpa %s586, 1

</llo_original>
